<compile_context>
chip_gen: v7x
topology: tpu7x:2x2x1
jax: 0.10.0
libtpu: 0.0.40
codegen_flags: <defaults>
</compile_context>

<pallas_src>
import jax
import jax.numpy as jnp
import numpy as np
from jax import lax
from jax.experimental import pallas as pl
from jax.experimental.pallas import tpu as pltpu  # noqa: F401  (TPU backend)


# ---------------------------------------------------------------------------
# Kernel 1: hoisted input projection  GI = X @ W + b  (one big MXU matmul).
# ---------------------------------------------------------------------------
def input_proj_kernel(x_ref, w_ref, b_ref, o_ref):
    o_ref[...] = (
        jnp.dot(x_ref[...], w_ref[...], preferred_element_type=jnp.float32)
        + b_ref[...]
    )


# ---------------------------------------------------------------------------
# Kernel 2: fused bidirectional GRU recurrence + tanh(fc(.)) head.
# ---------------------------------------------------------------------------
def bigru_kernel(gi_ref, whh_ref, bhn_ref, wfc_ref, bfc_ref,
                 out_ref, hid_ref):
    S = gi_ref.shape[0]
    B = gi_ref.shape[1]
    H2 = whh_ref.shape[0]            # 2 * enc_hid_dim (packed fwd|bwd)
    H = H2 // 2

    whh = whh_ref[...]               # (2H, 6H) block-diagonal per gate
    bhn = bhn_ref[...]               # (1, 2H)  b_hh of the n gate

    def step(t, h):
        # gi layout (B, 6H): [r_f r_b | z_f z_b | n_f n_b]; the backward half
        # was time-reversed in the wrapper, so the *_b columns at loop step t
        # correspond to original time S-1-t.
        gi = gi_ref[t]
        gh = jnp.dot(h, whh, preferred_element_type=jnp.float32)   # (B, 6H)
        r = jax.nn.sigmoid(gi[:, 0:H2] + gh[:, 0:H2])
        z = jax.nn.sigmoid(gi[:, H2:2 * H2] + gh[:, H2:2 * H2])
        n = jnp.tanh(gi[:, 2 * H2:] + r * (gh[:, 2 * H2:] + bhn))
        h_new = (1.0 - z) * n + z * h
        # Full-block stores into the packed output slab: forward hidden
        # belongs to time t, backward hidden to original time S-1-t.
        out_ref[t, 0] = h_new[:, 0:H]
        out_ref[S - 1 - t, 1] = h_new[:, H:]
        return h_new

    h0 = jnp.zeros((B, H2), jnp.float32)
    # S is small & static here -> fully unroll for LLO scheduler visibility.
    h_final = lax.fori_loop(0, S, step, h0, unroll=True)

    # hidden = tanh(fc(cat(h_fwd_final, h_bwd_final)));  h_final is already
    # packed as [h_fwd | h_bwd].
    hid_ref[...] = jnp.tanh(
        jnp.dot(h_final, wfc_ref[...], preferred_element_type=jnp.float32)
        + bfc_ref[...]
    )


# ---------------------------------------------------------------------------
# Wrapper: weight repacking + the two pallas_calls.
# ---------------------------------------------------------------------------
def encoder_forward(src, params):
    """src: int32 [S, B] token ids.  Returns (outputs [S,B,2H], hidden [B,D])."""
    emb_table = params["embedding"]                    # (V, E)
    embedded = emb_table[src]                          # (S, B, E) -- JAX gather glue
    # TODO(synk): dropout is identity here (inference mode only).

    S, B, E = embedded.shape
    H = params["whh_f"].shape[0]
    D = params["wfc"].shape[1]

    # ---- weight re-packing (layout plumbing, done once per call) -----------
    # Projection weight [W_ih_f | W_ih_b] : (E, 6H), gate order per dir (r,z,n).
    w_proj = jnp.concatenate([params["wih_f"], params["wih_b"]], axis=1)
    # Fold b_ih (all gates) and the r/z parts of b_hh into the projection bias.
    zeros_h = jnp.zeros((1, H), jnp.float32)
    b_proj = jnp.concatenate(
        [params["bih_f"]
         + jnp.concatenate([params["bhh_f"][:, :2 * H], zeros_h], axis=1),
         params["bih_b"]
         + jnp.concatenate([params["bhh_b"][:, :2 * H], zeros_h], axis=1)],
        axis=1)                                        # (1, 6H)

    # Block-diagonal recurrent weight, gate-major / direction-minor columns:
    # column block g*2H..g*2H+H acts on h_fwd via W_hh_f[:, gate g], the next
    # H columns act on h_bwd via W_hh_b[:, gate g].
    def gate_block(g):
        wf = params["whh_f"][:, g * H:(g + 1) * H]
        wb = params["whh_b"][:, g * H:(g + 1) * H]
        zero = jnp.zeros((H, H), jnp.float32)
        return jnp.concatenate(
            [jnp.concatenate([wf, zero], axis=1),
             jnp.concatenate([zero, wb], axis=1)], axis=0)          # (2H, 2H)

    whh_bd = jnp.concatenate([gate_block(0), gate_block(1), gate_block(2)],
                             axis=1)                   # (2H, 6H)
    bhn = jnp.concatenate([params["bhh_f"][:, 2 * H:],
                           params["bhh_b"][:, 2 * H:]], axis=1)      # (1, 2H)

    # ---- 1) hoisted input projection: one big matmul over the sequence -----
    # TODO(synk): tile this over rows (and use bf16 operands on v6e/v7x) for
    # large S*B / E instead of a single whole-array block.
    proj = pl.pallas_call(
        input_proj_kernel,
        out_shape=jax.ShapeDtypeStruct((S * B, 6 * H), jnp.float32),
    )(embedded.reshape(S * B, E), w_proj, b_proj)
    proj = proj.reshape(S, B, 6 * H)

    # Re-pack to the per-step layout consumed by the recurrent kernel:
    # [r_f r_b | z_f z_b | n_f n_b], with the backward half time-reversed so
    # loop step t reads the backward projection of original time S-1-t.
    pf = proj[:, :, 0:3 * H]
    pb = proj[::-1, :, 3 * H:]
    gi = jnp.concatenate(
        [pf[:, :, 0:H],     pb[:, :, 0:H],
         pf[:, :, H:2 * H], pb[:, :, H:2 * H],
         pf[:, :, 2 * H:],  pb[:, :, 2 * H:]], axis=-1)              # (S, B, 6H)

    # ---- 2) recurrence + head in a single pallas_call -----------------------
    # TODO(synk): for long sequences chunk time (grid over S//Tt with a VMEM
    # hidden carry) so gi / outputs stay inside the v7x 64 MiB VMEM budget.
    out_packed, hidden = pl.pallas_call(
        bigru_kernel,
        out_shape=(
            jax.ShapeDtypeStruct((S, 2, B, H), jnp.float32),
            jax.ShapeDtypeStruct((B, D), jnp.float32),
        ),
    )(gi, whh_bd, bhn, params["wfc"], params["bfc"])

    # (S, 2, B, H) -> (S, B, 2H); dim 1 is (forward, backward).
    outputs = out_packed.transpose(0, 2, 1, 3).reshape(S, B, 2 * H)
    return outputs, hidden


# ---------------------------------------------------------------------------
# Pure-JAX reference (correctness check).
# ---------------------------------------------------------------------------
def encoder_reference(src, params):
    embedded = params["embedding"][src].astype(jnp.float32)
    S, B, E = embedded.shape
    H = params["whh_f"].shape[0]

    def gru_scan(xs, wih, whh, bih, bhh):
        def step(h, x):
            gi = x @ wih + bih
            gh = h @ whh + bhh
            r = jax.nn.sigmoid(gi[:, :H] + gh[:, :H])
            z = jax.nn.sigmoid(gi[:, H:2 * H] + gh[:, H:2 * H])
            n = jnp.tanh(gi[:, 2 * H:] + r * gh[:, 2 * H:])
            h_new = (1.0 - z) * n + z * h
            return h_new, h_new
        h0 = jnp.zeros((B, H), jnp.float32)
        h_final, hs = lax.scan(step, h0, xs)
        return h_final, hs

    hf_final, hs_f = gru_scan(embedded, params["wih_f"], params["whh_f"],
                              params["bih_f"][0], params["bhh_f"][0])
    hb_final, hs_b_rev = gru_scan(embedded[::-1], params["wih_b"], params["whh_b"],
                                  params["bih_b"][0], params["bhh_b"][0])
    hs_b = hs_b_rev[::-1]
    outputs = jnp.concatenate([hs_f, hs_b], axis=-1)
    hid = jnp.tanh(jnp.concatenate([hf_final, hb_final], axis=-1)
                   @ params["wfc"] + params["bfc"][0])
    return outputs, hid


# ---------------------------------------------------------------------------
# Deterministic parameter init (shapes from Encoder.__init__).
# ---------------------------------------------------------------------------
def init_params(key, input_dim, emb_dim, enc_hid_dim, dec_hid_dim):
    ks = jax.random.split(key, 12)
    H, E, D = enc_hid_dim, emb_dim, dec_hid_dim
    s = 0.1
    return {
        "embedding": jax.random.normal(ks[0], (input_dim, E), jnp.float32) * s,
        # GRU weights stored pre-transposed: x @ W_ih (E,3H), h @ W_hh (H,3H)
        "wih_f": jax.random.normal(ks[1], (E, 3 * H), jnp.float32) * s,
        "whh_f": jax.random.normal(ks[2], (H, 3 * H), jnp.float32) * s,
        "bih_f": jax.random.normal(ks[3], (1, 3 * H), jnp.float32) * s,
        "bhh_f": jax.random.normal(ks[4], (1, 3 * H), jnp.float32) * s,
        "wih_b": jax.random.normal(ks[5], (E, 3 * H), jnp.float32) * s,
        "whh_b": jax.random.normal(ks[6], (H, 3 * H), jnp.float32) * s,
        "bih_b": jax.random.normal(ks[7], (1, 3 * H), jnp.float32) * s,
        "bhh_b": jax.random.normal(ks[8], (1, 3 * H), jnp.float32) * s,
        # fc: (2H -> D), stored pre-transposed
        "wfc": jax.random.normal(ks[9], (2 * H, D), jnp.float32) * s,
        "bfc": jax.random.normal(ks[10], (1, D), jnp.float32) * s,
    }


if __name__ == "__main__":
    INPUT_DIM = 20     # vocab size
    EMB_DIM = 16
    ENC_HID_DIM = 32
    DEC_HID_DIM = 24
    SEQ_LEN = 8
    BATCH = 2

    key = jax.random.PRNGKey(0)
    kp, ks = jax.random.split(key)
    params = init_params(kp, INPUT_DIM, EMB_DIM, ENC_HID_DIM, DEC_HID_DIM)
    src = jax.random.randint(ks, (SEQ_LEN, BATCH), 0, INPUT_DIM, dtype=jnp.int32)

    outputs, hidden = encoder_forward(src, params)
    outputs = jax.block_until_ready(outputs)
    hidden = jax.block_until_ready(hidden)

    ref_out, ref_hid = encoder_reference(src, params)
    np.testing.assert_allclose(np.asarray(outputs), np.asarray(ref_out),
                               rtol=1e-4, atol=1e-4)
    np.testing.assert_allclose(np.asarray(hidden), np.asarray(ref_hid),
                               rtol=1e-4, atol=1e-4)

    assert outputs.shape == (SEQ_LEN, BATCH, 2 * ENC_HID_DIM)
    assert hidden.shape == (BATCH, DEC_HID_DIM)
    print("KERNEL_OK")
</pallas_src>

<mosaic_0001>
module attributes {stable_mosaic.version = 11 : i64} {
  func.func @input_proj_kernel(%arg0: memref<16x16xf32, #tpu.memory_space<vmem>>, %arg1: memref<16x192xf32, #tpu.memory_space<vmem>>, %arg2: memref<1x192xf32, #tpu.memory_space<vmem>>, %arg3: memref<16x192xf32, #tpu.memory_space<vmem>>) attributes {dimension_semantics = [], scalar_prefetch = 0 : i64, scratch_operands = 0 : i64, tpu.core_type = #tpu.core_type<tc>} {
    %c0 = arith.constant 0 : index
    %c0_0 = arith.constant 0 : index
    %0 = vector.load %arg0[%c0, %c0_0] : memref<16x16xf32, #tpu.memory_space<vmem>>, vector<16x16xf32>
    %c0_1 = arith.constant 0 : index
    %c0_2 = arith.constant 0 : index
    %1 = vector.load %arg1[%c0_1, %c0_2] : memref<16x192xf32, #tpu.memory_space<vmem>>, vector<16x192xf32>
    %cst = arith.constant dense<0.000000e+00> : vector<16x192xf32>
    %2 = tpu.matmul %0, %1, %cst {dimension_numbers = #tpu.dot_dimension_numbers<[1], [0], [0], [1], [0, 0, 1, 1], [], []>} : vector<16x16xf32>, vector<16x192xf32>, vector<16x192xf32> -> vector<16x192xf32>
    %c0_3 = arith.constant 0 : index
    %c0_4 = arith.constant 0 : index
    %3 = vector.load %arg2[%c0_3, %c0_4] : memref<1x192xf32, #tpu.memory_space<vmem>>, vector<1x192xf32>
    %4 = vector.broadcast %3 : vector<1x192xf32> to vector<16x192xf32>
    %5 = arith.addf %2, %4 : vector<16x192xf32>
    %c0_5 = arith.constant 0 : index
    %c0_6 = arith.constant 0 : index
    %6 = vector.load %arg3[%c0_5, %c0_6] : memref<16x192xf32, #tpu.memory_space<vmem>>, vector<16x192xf32>
    tpu.vector_store %arg3[%c0_5, %c0_6], %5 {strides = array<i32>} : memref<16x192xf32, #tpu.memory_space<vmem>>, vector<16x192xf32>,
    return
  }
}

</mosaic_0001>

<llo_original>
// kernel: tpu_custom_call.1
$region0: #{tpu_custom_call.1}
  #allocation0 [shape = 'u32[]', space=smem, size = 0x4, offset = 0x4, fixed_abs, tag = 'smem constant byte address 0x4 - core index']
  #allocation1 [shape = 'u32[144,128]{1,0:T(1,128)}', space=vmem, size = 0x12000, scoped, tag = 'internal scratch']
  %s0 = inlined_call_operand.hbm [shape: f32[16,16], index: 0, kind: input, shape index: {}]
  %s1 = inlined_call_operand.hbm [shape: f32[16,192], index: 1, kind: input, shape index: {}]
  %s2 = inlined_call_operand.vmem [shape: f32[1,192], index: 2, kind: input, shape index: {}]
  %s3 = inlined_call_operand.hbm [shape: f32[16,192], index: 3, kind: output, shape index: {}]
  %s4 = sld [smem:[#allocation0]]
  $region30: #{tpu_custom_call.1} parent=0
    _
  %s6 = ssub.s32 1, %s4
  %s7 = scalar_select 0, %s6, %s4
  $region1: #{tpu_custom_call.1} parent=0
    #allocation2 [shape = 'u8[8192]{0}', space=vmem, size = 0x2000, scoped, tag = 'input window, operand 0, single buffered']
    #allocation3 [shape = 's32[1]{0}', space=sflag, size = 0x4, scoped, tag = 'scoped memory for tpu_custom_call.1']
    #allocation4 [shape = 's32[1]{0}', space=sflag, size = 0x4, scoped, tag = 'scoped memory for tpu_custom_call.1']
    #allocation5 [shape = 'u8[16384]{0}', space=vmem, size = 0x4000, scoped, tag = 'input window, operand 1, single buffered']
    #allocation6 [shape = 's32[1]{0}', space=sflag, size = 0x4, scoped, tag = 'scoped memory for tpu_custom_call.1']
    #allocation7 [shape = 'u8[16384]{0}', space=vmem, size = 0x4000, scoped, tag = 'output window, operand 0, single buffered']
    %8 = vsyncpa [#allocation3], 0
    %9 = vsyncpa [#allocation6], 0
    %10 = vsyncpa [#allocation4], 0
    // Predicated region
    $region2: #{tpu_custom_call.1} parent=1 // pred_check
      _
    $region3: #{tpu_custom_call.1} parent=1 // pred_check_branch
      %12 = sbr.rel (0) target = $region5
    $region4: #{tpu_custom_call.1} parent=1 // pred_region
      %s14 = ssub.s32 256, 256
      %15 = vsyncadd [#allocation3], %s14
      %s16 = sshll.u32 [#allocation2], 4
      %s17 = int_to_ptr.vmem [resolvable:$true] %s16
      %22 = dma.hbm_to_vmem [thread:$0]  %s0, 256, %s17, [#allocation3], 128, 128, 8
    $region5: #{tpu_custom_call.1} parent=1 // pred_fallthru
      _
    // Predicated region
    $region6: #{tpu_custom_call.1} parent=1 // pred_check
      _
    $region7: #{tpu_custom_call.1} parent=1 // pred_check_branch
      %24 = sbr.rel (0) target = $region9
    $region8: #{tpu_custom_call.1} parent=1 // pred_region
      %s26 = ssub.s32 512, 512
      %27 = vsyncadd [#allocation6], %s26
      %s28 = sshll.u32 [#allocation5], 4
      %s29 = int_to_ptr.vmem [resolvable:$true] %s28
      %34 = dma.hbm_to_vmem [thread:$0]  %s1, 512, %s29, [#allocation6], 256, 256, 16
    $region9: #{tpu_custom_call.1} parent=1 // pred_fallthru
      _
    // Predicated region
    $region10: #{tpu_custom_call.1} parent=1 // pred_check
      _
    $region11: #{tpu_custom_call.1} parent=1 // pred_check_branch
      %36 = sbr.rel (0) target = $region13
    $region12: #{tpu_custom_call.1} parent=1 // pred_region
      _
    $region13: #{tpu_custom_call.1} parent=1 // pred_fallthru
      _
    // Predicated region
    $region14: #{tpu_custom_call.1} parent=1 // pred_check
      _
    $region15: #{tpu_custom_call.1} parent=1 // pred_check_branch
      %38 = sbr.rel (0) target = $region17
    $region16: #{tpu_custom_call.1} parent=1 // pred_region
      %39 = dma.done [#allocation3], 256
    $region17: #{tpu_custom_call.1} parent=1 // pred_fallthru
      _
    // Predicated region
    $region18: #{tpu_custom_call.1} parent=1 // pred_check
      _
    $region19: #{tpu_custom_call.1} parent=1 // pred_check_branch
      %41 = sbr.rel (0) target = $region21
    $region20: #{tpu_custom_call.1} parent=1 // pred_region
      %42 = dma.done [#allocation6], 512
    $region21: #{tpu_custom_call.1} parent=1 // pred_fallthru
      _
    %v43 = vld [vmem:[#allocation2] sm:$0xff]
    %v44 = vld [vmem:[#allocation2 + $0x8] sm:$0xff]
    %v45 = vld [vmem:[#allocation5] sm:$0xff]
    %v46 = vld [vmem:[#allocation5 + $0x8] sm:$0xff]
    %v47 = vld [vmem:[#allocation5 + $0x10] sm:$0xff]
    %v48 = vld [vmem:[#allocation5 + $0x18] sm:$0xff]
    %v49 = vld [vmem:[%s2] sm:$0x3]
    %v51 = vlaneseq
    %v52 = vshrl.u32 %v51, 7
    %v53 = vsub.s32 0, %v52
    %v54 = vrot.slane %v49, %v53
    %v55 = vlaneseq
    %v56 = vshrl.u32 %v55, 7
    %v57 = vsub.s32 1, %v56
    %v58 = vrot.slane %v49, %v57
    %vm61 = vcmask 130048
    %v63 = vsel %vm61, %v43, 0
    %v66 = vsel %vm61, %v44, 0
    %68 = vmatprep.subr.mxu0 %v46
    %69 = vmatpush1.msra.mxu0 %v45
    %70 = vmatprep.subr.mxu0 %v48
    %71 = vmatpush1.msra.mxu0 %v47
    %72 = vmatprep.subr.mxu0 0.0
    %73 = vmatpush1.msra.mxu0 0.0
    %74 = vmatprep.subr.mxu0 0.0
    %75 = vmatpush1.msra.mxu0 0.0
    %76 = vmatprep.subr.mxu0 0.0
    %77 = vmatpush1.msra.mxu0 0.0
    %78 = vmatprep.subr.mxu0 0.0
    %79 = vmatpush1.msra.mxu0 0.0
    %80 = vmatprep.subr.mxu0 0.0
    %81 = vmatpush1.msra.mxu0 0.0
    %82 = vmatprep.subr.mxu0 0.0
    %83 = vmatpush1.msra.mxu0 0.0
    %84 = vmatprep.subr.mxu0 0.0
    %85 = vmatpush1.msra.mxu0 0.0
    %86 = vmatprep.subr.mxu0 0.0
    %87 = vmatpush1.msra.mxu0 0.0
    %88 = vmatprep.subr.mxu0 0.0
    %89 = vmatpush1.msra.mxu0 0.0
    %90 = vmatprep.subr.mxu0 0.0
    %91 = vmatpush1.msra.mxu0 0.0
    %92 = vmatprep.subr.mxu0 0.0
    %93 = vmatpush1.msra.mxu0 0.0
    %94 = vmatprep.subr.mxu0 0.0
    %95 = vmatpush1.msra.mxu0 0.0
    %96 = vmatprep.subr.mxu0 0.0
    %97 = vmatpush1.msra.mxu0 0.0
    %98 = vmatprep.subr.mxu0 0.0
    %99 = vmatpush1.msra.mxu0 0.0
    %100 = vmatprep.subr.mxu0 0.0
    %101 = vmatpush1.msra.mxu0 0.0
    %102 = vmatprep.subr.mxu0 0.0
    %103 = vmatpush1.msra.mxu0 0.0
    %104 = vmatprep.subr.mxu0 0.0
    %105 = vmatpush1.msra.mxu0 0.0
    %106 = vmatprep.subr.mxu0 0.0
    %107 = vmatpush1.msra.mxu0 0.0
    %108 = vmatprep.subr.mxu0 0.0
    %109 = vmatpush1.msra.mxu0 0.0
    %110 = vmatprep.subr.mxu0 0.0
    %111 = vmatpush1.msra.mxu0 0.0
    %112 = vmatprep.subr.mxu0 0.0
    %113 = vmatpush1.msra.mxu0 0.0
    %114 = vmatprep.subr.mxu0 0.0
    %115 = vmatpush1.msra.mxu0 0.0
    %116 = vmatprep.subr.mxu0 0.0
    %117 = vmatpush1.msra.mxu0 0.0
    %118 = vmatprep.subr.mxu0 0.0
    %119 = vmatpush1.msra.mxu0 0.0
    %120 = vmatprep.subr.mxu0 0.0
    %121 = vmatpush1.msra.mxu0 0.0
    %122 = vmatprep.subr.mxu0 0.0
    %123 = vmatpush1.msra.mxu0 0.0
    %124 = vmatprep.subr.mxu0 0.0
    %125 = vmatpush1.msra.mxu0 0.0
    %126 = vmatprep.subr.mxu0 0.0
    %127 = vmatpush1.msra.mxu0 0.0
    %128 = vmatprep.subr.mxu0 0.0
    %129 = vmatpush1.msra.mxu0 0.0
    %130 = vmatprep.subr.mxu0 0.0
    %131 = vmatpush1.msra.mxu0 0.0
    %132 = vmatprep.mubr.f32.mxu0 0.0
    %133 = vmatmul.mubr.f32.gmra.mrb[0].mxu0 %v63
    %v134 = vpop.f32.mrb[0].mxu0
    %v135 = vadd.f32 %v54, %v134
    %v136 = vpop.f32.mrb[0].mxu0
    %v137 = vadd.f32 %v58, %v136
    %138 = vmatprep.mubr.f32.mxu0 0.0
    %139 = vmatmul.mubr.f32.gmra.mrb[0].mxu0 %v66
    %v140 = vpop.f32.mrb[0].mxu0
    %v141 = vadd.f32 %v54, %v140
    %v142 = vpop.f32.mrb[0].mxu0
    %v143 = vadd.f32 %v58, %v142
    %144 = vdwg.mxu0
    %145 = vst [vmem:[#allocation7] sm:$0xff] %v135
    %vm146 = vcmask 523264
    %147 = vst.msk [vmem:[#allocation7 + $0x8] sm:$0xff] %vm146, %v137
    %148 = vst [vmem:[#allocation7 + $0x10] sm:$0xff] %v141
    %149 = vst.msk [vmem:[#allocation7 + $0x18] sm:$0xff] %vm146, %v143
    // Predicated region
    $region22: #{tpu_custom_call.1} parent=1 // pred_check
      _
    $region23: #{tpu_custom_call.1} parent=1 // pred_check_branch
      %151 = sbr.rel (0) target = $region25
    $region24: #{tpu_custom_call.1} parent=1 // pred_region
      %s153 = ssub.s32 512, 512
      %154 = vsyncadd [#allocation4], %s153
      %s155 = sshll.u32 [#allocation7], 4
      %s156 = int_to_ptr.vmem [resolvable:$true] %s155
      %161 = dma.vmem_to_hbm [thread:$0]  %s156, 512, %s3, [#allocation4], 256, 256, 16
    $region25: #{tpu_custom_call.1} parent=1 // pred_fallthru
      _
    // Predicated region
    $region26: #{tpu_custom_call.1} parent=1 // pred_check
      _
    $region27: #{tpu_custom_call.1} parent=1 // pred_check_branch
      %163 = sbr.rel (0) target = $region29
    $region28: #{tpu_custom_call.1} parent=1 // pred_region
      %164 = dma.done [#allocation4], 512
    $region29: #{tpu_custom_call.1} parent=1 // pred_fallthru
      _
    %165 = vsyncpa [#allocation3], 1
    %166 = vsyncpa [#allocation6], 1
    %167 = vsyncpa [#allocation4], 1

</llo_original>
